<compile_context>
chip_gen: v7x
topology: tpu7x:2x2x1
jax: 0.10.0
libtpu: 0.0.40
codegen_flags: <defaults>
</compile_context>

<pallas_src>
import functools

import jax
import jax.numpy as jnp
from jax.experimental import pallas as pl
from jax.experimental.pallas import tpu as pltpu

# ----------------------------- model dims (small) ---------------------------
B = 2              # batch
C = 4              # chunks per example
H = 32             # hidden_size (small stand-in for 768)
T_DIM = 32         # temporal embedding dim
NUM_STOCKS = 10
STOCK_DIM = 16
NUM_LABELS = 3
CLF_HIDDEN = 256
COMBINED = H + T_DIM + STOCK_DIM     # 80

K_PAD = 128        # classifier input padded to a full lane width
OUT_PAD = 128      # output logits padded to a full lane width (lane-dense store)
BIAS_LANE = COMBINED               # unused combined lane carrying constant 1.0 (b1 fold)
W_SLAB_ROWS = H + K_PAD + CLF_HIDDEN   # 416 (multiple of 8)
W_SLAB_LANES = 256


# --------------------------------- kernel -----------------------------------
def hbert_kernel(num_chunks, bp,
                 act_ref,    # ((C+1)*BP, K_PAD): rows [0:C*BP) cls (chunk-major,
                             #   lanes 0:H); rows [C*BP:(C+1)*BP) extras:
                             #   lane 0 = time value, lanes [H+T_DIM:H+T_DIM+STOCK_DIM)
                             #   = stock embedding, lane BIAS_LANE = 1.0
                 w_ref,      # (W_SLAB_ROWS, 256): rows [0:H) pooler W^T (lanes 0:H),
                             #   rows [H:H+K_PAD) classifier W1^T padded (+ b1 folded
                             #   into row H+BIAS_LANE), rows [H+K_PAD:) W2^T (lanes 0:OUT_PAD)
                 s_ref,      # (8, 256) small params: r0 pooler_b, r1 attn_w, r2 attn_b,
                             #   r3 temp_w, r4 temp_b, r6 b2 (lanes 0:OUT_PAD)
                 out_ref):   # (BP, OUT_PAD)
    f32 = jnp.float32
    cb = num_chunks * bp

    # ---- packed-slab static views (3 DMAs total for the whole kernel) ----
    cls = act_ref[0:cb, 0:H]                                   # (C*BP, H)
    extras = act_ref[cb:cb + bp, :]                            # (BP, K_PAD)

    wp = w_ref[0:H, 0:H]                                       # (H, H)
    w1 = w_ref[H:H + K_PAD, :]                                 # (K_PAD, CLF_HIDDEN)
    w2 = w_ref[H + K_PAD:H + K_PAD + CLF_HIDDEN, 0:OUT_PAD]    # (CLF_HIDDEN, OUT_PAD)

    b_pool = s_ref[0:1, 0:H]
    wa = s_ref[1:2, 0:H]
    ba = s_ref[2:3, 0:1]
    wt = s_ref[3:4, 0:T_DIM]
    bt = s_ref[4:5, 0:T_DIM]
    b2 = s_ref[6:7, 0:OUT_PAD]

    # ---- pooler: all (chunk, batch) rows in one dense 2-D MXU matmul ----
    pooled = jnp.tanh(
        jnp.dot(cls, wp, preferred_element_type=f32) + b_pool)    # (C*BP, H)

    # ---- attention logits: ONE fused VPU multiply + lane reduce over the
    #      whole pooled block (instead of per-chunk reduces) ----
    logits_all = jnp.sum(pooled * wa, axis=-1, keepdims=True) + ba   # (C*BP, 1)

    # ---- softmax over chunks: sublane-aligned (BP, .) slices; accumulators
    #      seeded with the first chunk term; EUP approx reciprocal ----
    chunks = [pooled[ci * bp:(ci + 1) * bp, :] for ci in range(num_chunks)]
    lgs = [logits_all[ci * bp:(ci + 1) * bp, :] for ci in range(num_chunks)]
    m = lgs[0]
    for lg in lgs[1:]:
        m = jnp.maximum(m, lg)
    w0 = jnp.exp(lgs[0] - m)                                   # (BP, 1)
    den = w0
    text = w0 * chunks[0]
    for ch, lg in zip(chunks[1:], lgs[1:]):
        wc = jnp.exp(lg - m)
        den = den + wc
        text = text + wc * ch
    text = text * pl.reciprocal(den, approx=True)              # (BP, H)

    # ---- temporal embedding: K=1 matmul is a rank-1 outer product -> VPU ----
    temp = jnp.tanh(extras[:, 0:1] * wt + bt)                  # (BP, T_DIM)

    # ---- classifier: one lane-dense (BP, 128) block, single fused matmul ----
    # extras lanes [H+T_DIM:K_PAD) already carry the stock embedding, padding,
    # and the constant 1.0 at BIAS_LANE so b1 is folded into the w1 slab.
    # (Lane-wise concat of vreg-resident segments lowers to lane selects, not
    #  a VMEM round-trip, at these widths.)
    combined = jnp.concatenate([text, temp, extras[:, H + T_DIM:]], axis=-1)  # (BP, K_PAD)
    hid = jnp.maximum(
        jnp.dot(combined, w1, preferred_element_type=f32), 0.0)               # (BP, 256)
    out_ref[...] = jnp.dot(hid, w2, preferred_element_type=f32) + b2          # (BP, OUT_PAD)


# -------------------------------- params -------------------------------------
def init_params(key):
    ks = jax.random.split(key, 10)
    scale = 0.05
    p = {
        'pooler_w': scale * jax.random.normal(ks[0], (H, H), jnp.float32),   # [out, in]
        'pooler_b': scale * jax.random.normal(ks[1], (H,), jnp.float32),
        'attn_w':   scale * jax.random.normal(ks[2], (1, H), jnp.float32),
        'attn_b':   scale * jax.random.normal(ks[3], (1,), jnp.float32),
        'temp_w':   scale * jax.random.normal(ks[4], (T_DIM, 1), jnp.float32),
        'temp_b':   scale * jax.random.normal(ks[5], (T_DIM,), jnp.float32),
        'stock_tab': scale * jax.random.normal(ks[6], (NUM_STOCKS, STOCK_DIM), jnp.float32),
        'w1': scale * jax.random.normal(ks[7], (CLF_HIDDEN, COMBINED), jnp.float32),
        'b1': scale * jax.random.normal(ks[8], (CLF_HIDDEN,), jnp.float32),
        'w2': scale * jax.random.normal(ks[9], (NUM_LABELS, CLF_HIDDEN), jnp.float32),
        'b2': jnp.zeros((NUM_LABELS,), jnp.float32),
    }
    return p


def pack_params(p):
    """One-time weight plumbing: [in,out] transposes, lane padding, b1 fold.

    Hoisted out of the per-call forward so no transpose/pad HBM traffic is paid
    per forward pass.
    """
    f32 = jnp.float32
    w_slab = jnp.zeros((W_SLAB_ROWS, W_SLAB_LANES), f32)
    w_slab = w_slab.at[:H, :H].set(p['pooler_w'].T)                       # pooler W^T
    w_slab = w_slab.at[H:H + COMBINED, :].set(p['w1'].T)                  # classifier W1^T
    w_slab = w_slab.at[H + BIAS_LANE, :].set(p['b1'])                     # b1 fold (lane 80 = 1.0)
    w_slab = w_slab.at[H + K_PAD:, :NUM_LABELS].set(p['w2'].T)            # classifier W2^T

    s_slab = jnp.zeros((8, W_SLAB_LANES), f32)
    s_slab = s_slab.at[0, :H].set(p['pooler_b'])
    s_slab = s_slab.at[1, :H].set(p['attn_w'][0])
    s_slab = s_slab.at[2, 0].set(p['attn_b'][0])
    s_slab = s_slab.at[3, :T_DIM].set(p['temp_w'][:, 0])
    s_slab = s_slab.at[4, :T_DIM].set(p['temp_b'])
    s_slab = s_slab.at[6, :NUM_LABELS].set(p['b2'])

    return {'w_slab': w_slab, 's_slab': s_slab, 'stock_tab': p['stock_tab']}


# -------------------------------- wrapper ------------------------------------
@jax.jit
def hbert_forward(cls_emb, time_values, stock_indices, packed):
    """cls_emb: [B, C, H] f32, time_values: [B] f32, stock_indices: [B] int32."""
    f32 = jnp.float32
    b, c, h = cls_emb.shape
    bp = ((b + 7) // 8) * 8            # pad batch / sublane dim to a multiple of 8

    # ---- activation plumbing (all XLA under jit; one packed slab -> 1 DMA) ----
    cls_p = jnp.zeros((bp, c, h), f32).at[:b].set(cls_emb.astype(f32))
    # chunk-major flatten: row index = chunk*bp + batch, so each chunk is a
    # sublane-aligned (bp, h) slice inside the kernel.
    cls_cm = jnp.transpose(cls_p, (1, 0, 2)).reshape(c * bp, h)
    # Stock-embedding gather done here (XLA) instead of an in-kernel one-hot
    # matmul; placed directly at its combined-lane offset.
    stock = packed['stock_tab'][stock_indices].astype(f32)                # (b, STOCK_DIM)

    act = jnp.zeros(((c + 1) * bp, K_PAD), f32)
    act = act.at[:c * bp, :h].set(cls_cm)
    act = act.at[c * bp:c * bp + b, 0].set(time_values.astype(f32))
    act = act.at[c * bp:c * bp + b, h + T_DIM:h + T_DIM + STOCK_DIM].set(stock)
    act = act.at[c * bp:(c + 1) * bp, BIAS_LANE].set(1.0)                 # b1-fold constant

    inputs = (act, packed['w_slab'], packed['s_slab'])

    cost = pl.CostEstimate(
        flops=2 * c * bp * h * h + 2 * bp * K_PAD * CLF_HIDDEN + 2 * bp * CLF_HIDDEN * OUT_PAD,
        transcendentals=c * bp * h + bp * T_DIM + c * bp + bp,
        bytes_accessed=sum(int(x.size) * x.dtype.itemsize for x in inputs)
                       + bp * OUT_PAD * 4,
    )

    out_pad = pl.pallas_call(
        functools.partial(hbert_kernel, c, bp),
        out_shape=jax.ShapeDtypeStruct((bp, OUT_PAD), jnp.float32),
        in_specs=[pl.BlockSpec(memory_space=pltpu.MemorySpace.VMEM)] * len(inputs),
        out_specs=pl.BlockSpec(memory_space=pltpu.MemorySpace.VMEM),
        cost_estimate=cost,
    )(*inputs)

    return out_pad[:b, :NUM_LABELS]


# ------------------------- pure-JAX reference (check) ------------------------
def hbert_reference(cls_emb, time_values, stock_indices, p):
    pooled = jnp.tanh(jnp.einsum('bch,oh->bco', cls_emb, p['pooler_w']) + p['pooler_b'])
    logits = jnp.einsum('bch,oh->bco', pooled, p['attn_w']) + p['attn_b']     # [B,C,1]
    attn = jax.nn.softmax(logits, axis=1)
    text = jnp.sum(pooled * attn, axis=1)                                     # [B,H]
    temp = jnp.tanh(time_values[:, None] @ p['temp_w'].T + p['temp_b'])       # [B,32]
    stock = p['stock_tab'][stock_indices]                                     # [B,16]
    combined = jnp.concatenate([text, temp, stock], axis=1)
    hh = jnp.maximum(combined @ p['w1'].T + p['b1'], 0.0)
    return hh @ p['w2'].T + p['b2']


# ---------------------------------- main -------------------------------------
if __name__ == "__main__":
    key = jax.random.PRNGKey(0)
    k_param, k_cls, k_time, k_stock = jax.random.split(key, 4)

    params = init_params(k_param)
    packed = pack_params(params)     # one-time weight plumbing (hoisted out of forward)

    # synthetic per-chunk CLS embeddings stand in for the FinBERT encoder output
    cls_emb = jax.random.normal(k_cls, (B, C, H), jnp.float32)
    time_values = jax.random.uniform(k_time, (B,), jnp.float32)
    stock_indices = jax.random.randint(k_stock, (B,), 0, NUM_STOCKS, jnp.int32)

    out = hbert_forward(cls_emb, time_values, stock_indices, packed)
    out = jax.block_until_ready(out)

    ref = hbert_reference(cls_emb, time_values, stock_indices, params)
    assert out.shape == (B, NUM_LABELS)
    # tolerance loosened vs. 1e-4 because of pl.reciprocal(approx=True)
    assert jnp.allclose(out, ref, atol=5e-3, rtol=5e-3), (out, ref)

    print("KERNEL_OK")
</pallas_src>

<mosaic_0001>
module attributes {stable_mosaic.version = 11 : i64} {
  func.func @hbert_kernel(%arg0: memref<40x128xf32, #tpu.memory_space<vmem>>, %arg1: memref<416x256xf32, #tpu.memory_space<vmem>>, %arg2: memref<8x256xf32, #tpu.memory_space<vmem>>, %arg3: memref<8x128xf32, #tpu.memory_space<vmem>>) attributes {dimension_semantics = [], scalar_prefetch = 0 : i64, scratch_operands = 0 : i64, tpu.core_type = #tpu.core_type<tc>} {
    %c0 = arith.constant 0 : index
    %c0_0 = arith.constant 0 : index
    %0 = vector.load %arg0[%c0, %c0_0] : memref<40x128xf32, #tpu.memory_space<vmem>>, vector<32x32xf32>
    %c32 = arith.constant 32 : index
    %c0_1 = arith.constant 0 : index
    %1 = vector.load %arg0[%c32, %c0_1] : memref<40x128xf32, #tpu.memory_space<vmem>>, vector<8x128xf32>
    %c0_2 = arith.constant 0 : index
    %c0_3 = arith.constant 0 : index
    %2 = vector.load %arg1[%c0_2, %c0_3] : memref<416x256xf32, #tpu.memory_space<vmem>>, vector<32x32xf32>
    %c32_4 = arith.constant 32 : index
    %c0_5 = arith.constant 0 : index
    %3 = vector.load %arg1[%c32_4, %c0_5] : memref<416x256xf32, #tpu.memory_space<vmem>>, vector<128x256xf32>
    %c160 = arith.constant 160 : index
    %c0_6 = arith.constant 0 : index
    %4 = vector.load %arg1[%c160, %c0_6] : memref<416x256xf32, #tpu.memory_space<vmem>>, vector<256x128xf32>
    %c0_7 = arith.constant 0 : index
    %c0_8 = arith.constant 0 : index
    %5 = vector.load %arg2[%c0_7, %c0_8] : memref<8x256xf32, #tpu.memory_space<vmem>>, vector<1x32xf32>
    %c1 = arith.constant 1 : index
    %c0_9 = arith.constant 0 : index
    %6 = vector.load %arg2[%c1, %c0_9] : memref<8x256xf32, #tpu.memory_space<vmem>>, vector<1x32xf32>
    %c2 = arith.constant 2 : index
    %c0_10 = arith.constant 0 : index
    %7 = vector.load %arg2[%c2, %c0_10] : memref<8x256xf32, #tpu.memory_space<vmem>>, vector<1x1xf32>
    %c3 = arith.constant 3 : index
    %c0_11 = arith.constant 0 : index
    %8 = vector.load %arg2[%c3, %c0_11] : memref<8x256xf32, #tpu.memory_space<vmem>>, vector<1x32xf32>
    %c4 = arith.constant 4 : index
    %c0_12 = arith.constant 0 : index
    %9 = vector.load %arg2[%c4, %c0_12] : memref<8x256xf32, #tpu.memory_space<vmem>>, vector<1x32xf32>
    %c6 = arith.constant 6 : index
    %c0_13 = arith.constant 0 : index
    %10 = vector.load %arg2[%c6, %c0_13] : memref<8x256xf32, #tpu.memory_space<vmem>>, vector<1x128xf32>
    %cst = arith.constant dense<0.000000e+00> : vector<32x32xf32>
    %11 = tpu.matmul %0, %2, %cst {dimension_numbers = #tpu.dot_dimension_numbers<[1], [0], [0], [1], [0, 0, 1, 1], [], []>} : vector<32x32xf32>, vector<32x32xf32>, vector<32x32xf32> -> vector<32x32xf32>
    %12 = vector.broadcast %5 : vector<1x32xf32> to vector<32x32xf32>
    %13 = arith.addf %11, %12 : vector<32x32xf32>
    %14 = math.tanh %13 : vector<32x32xf32>
    %15 = vector.broadcast %6 : vector<1x32xf32> to vector<32x32xf32>
    %16 = arith.mulf %14, %15 : vector<32x32xf32>
    %cst_14 = arith.constant dense<0.000000e+00> : vector<32xf32>
    %17 = vector.multi_reduction <add>, %16, %cst_14 [1] : vector<32x32xf32> to vector<32xf32>
    %18 = vector.shape_cast %17 : vector<32xf32> to vector<32x1xf32>
    %19 = vector.broadcast %7 : vector<1x1xf32> to vector<32x1xf32>
    %20 = arith.addf %18, %19 : vector<32x1xf32>
    %21 = vector.extract_strided_slice %14 {offsets = [0, 0], sizes = [8, 32], strides = [1, 1]} : vector<32x32xf32> to vector<8x32xf32>
    %22 = vector.extract_strided_slice %14 {offsets = [8, 0], sizes = [8, 32], strides = [1, 1]} : vector<32x32xf32> to vector<8x32xf32>
    %23 = vector.extract_strided_slice %14 {offsets = [16, 0], sizes = [8, 32], strides = [1, 1]} : vector<32x32xf32> to vector<8x32xf32>
    %24 = vector.extract_strided_slice %14 {offsets = [24, 0], sizes = [8, 32], strides = [1, 1]} : vector<32x32xf32> to vector<8x32xf32>
    %25 = vector.extract_strided_slice %20 {offsets = [0, 0], sizes = [8, 1], strides = [1, 1]} : vector<32x1xf32> to vector<8x1xf32>
    %26 = vector.extract_strided_slice %20 {offsets = [8, 0], sizes = [8, 1], strides = [1, 1]} : vector<32x1xf32> to vector<8x1xf32>
    %27 = vector.extract_strided_slice %20 {offsets = [16, 0], sizes = [8, 1], strides = [1, 1]} : vector<32x1xf32> to vector<8x1xf32>
    %28 = vector.extract_strided_slice %20 {offsets = [24, 0], sizes = [8, 1], strides = [1, 1]} : vector<32x1xf32> to vector<8x1xf32>
    %29 = arith.maximumf %25, %26 : vector<8x1xf32>
    %30 = arith.maximumf %29, %27 : vector<8x1xf32>
    %31 = arith.maximumf %30, %28 : vector<8x1xf32>
    %32 = arith.subf %25, %31 : vector<8x1xf32>
    %33 = math.exp %32 : vector<8x1xf32>
    %34 = vector.broadcast %33 : vector<8x1xf32> to vector<8x32xf32>
    %35 = arith.mulf %34, %21 : vector<8x32xf32>
    %36 = arith.subf %26, %31 : vector<8x1xf32>
    %37 = math.exp %36 : vector<8x1xf32>
    %38 = arith.addf %33, %37 : vector<8x1xf32>
    %39 = vector.broadcast %37 : vector<8x1xf32> to vector<8x32xf32>
    %40 = arith.mulf %39, %22 : vector<8x32xf32>
    %41 = arith.addf %35, %40 : vector<8x32xf32>
    %42 = arith.subf %27, %31 : vector<8x1xf32>
    %43 = math.exp %42 : vector<8x1xf32>
    %44 = arith.addf %38, %43 : vector<8x1xf32>
    %45 = vector.broadcast %43 : vector<8x1xf32> to vector<8x32xf32>
    %46 = arith.mulf %45, %23 : vector<8x32xf32>
    %47 = arith.addf %41, %46 : vector<8x32xf32>
    %48 = arith.subf %28, %31 : vector<8x1xf32>
    %49 = math.exp %48 : vector<8x1xf32>
    %50 = arith.addf %44, %49 : vector<8x1xf32>
    %51 = vector.broadcast %49 : vector<8x1xf32> to vector<8x32xf32>
    %52 = arith.mulf %51, %24 : vector<8x32xf32>
    %53 = arith.addf %47, %52 : vector<8x32xf32>
    %54 = tpu.reciprocal %50 {approx = true} : vector<8x1xf32> -> vector<8x1xf32>
    %55 = vector.broadcast %54 : vector<8x1xf32> to vector<8x32xf32>
    %56 = arith.mulf %53, %55 : vector<8x32xf32>
    %57 = vector.extract_strided_slice %1 {offsets = [0, 0], sizes = [8, 1], strides = [1, 1]} : vector<8x128xf32> to vector<8x1xf32>
    %58 = vector.broadcast %57 : vector<8x1xf32> to vector<8x32xf32>
    %59 = vector.broadcast %8 : vector<1x32xf32> to vector<8x32xf32>
    %60 = arith.mulf %58, %59 : vector<8x32xf32>
    %61 = vector.broadcast %9 : vector<1x32xf32> to vector<8x32xf32>
    %62 = arith.addf %60, %61 : vector<8x32xf32>
    %63 = math.tanh %62 : vector<8x32xf32>
    %64 = vector.extract_strided_slice %1 {offsets = [0, 64], sizes = [8, 64], strides = [1, 1]} : vector<8x128xf32> to vector<8x64xf32>
    %65 = tpu.concatenate %56, %63, %64 in 1 : vector<8x32xf32>, vector<8x32xf32>, vector<8x64xf32> -> vector<8x128xf32>
    %cst_15 = arith.constant dense<0.000000e+00> : vector<8x256xf32>
    %66 = tpu.matmul %65, %3, %cst_15 {dimension_numbers = #tpu.dot_dimension_numbers<[1], [0], [0], [1], [0, 0, 1, 1], [], []>} : vector<8x128xf32>, vector<128x256xf32>, vector<8x256xf32> -> vector<8x256xf32>
    %cst_16 = arith.constant 0.000000e+00 : f32
    %67 = vector.broadcast %cst_16 : f32 to vector<8x256xf32>
    %68 = arith.maximumf %66, %67 : vector<8x256xf32>
    %cst_17 = arith.constant dense<0.000000e+00> : vector<8x128xf32>
    %69 = tpu.matmul %68, %4, %cst_17 {dimension_numbers = #tpu.dot_dimension_numbers<[1], [0], [0], [1], [0, 0, 1, 1], [], []>} : vector<8x256xf32>, vector<256x128xf32>, vector<8x128xf32> -> vector<8x128xf32>
    %70 = vector.broadcast %10 : vector<1x128xf32> to vector<8x128xf32>
    %71 = arith.addf %69, %70 : vector<8x128xf32>
    %c0_18 = arith.constant 0 : index
    %c0_19 = arith.constant 0 : index
    %72 = vector.load %arg3[%c0_18, %c0_19] : memref<8x128xf32, #tpu.memory_space<vmem>>, vector<8x128xf32>
    tpu.vector_store %arg3[%c0_18, %c0_19], %71 {strides = array<i32>} : memref<8x128xf32, #tpu.memory_space<vmem>>, vector<8x128xf32>,
    return
  }
}

</mosaic_0001>

<llo_original>
// kernel: hbert_forward.1
$region0: #{hbert_forward.1}
  #allocation0 [shape = 'u32[]', space=smem, size = 0x4, offset = 0x4, fixed_abs, tag = 'smem constant byte address 0x4 - core index']
  #allocation1 [shape = 'u32[144,128]{1,0:T(1,128)}', space=vmem, size = 0x12000, scoped, tag = 'internal scratch']
  %s0 = inlined_call_operand.vmem [shape: f32[40,128], index: 0, kind: input, shape index: {}]
  %s1 = inlined_call_operand.hbm [shape: f32[416,256], index: 1, kind: input, shape index: {}]
  %s2 = inlined_call_operand.vmem [shape: f32[8,256], index: 2, kind: input, shape index: {}]
  %s3 = inlined_call_operand.vmem [shape: f32[8,128], index: 3, kind: output, shape index: {}]
  %s4 = sld [smem:[#allocation0]]
  $region26: #{hbert_forward.1} parent=0
    _
  %s6 = ssub.s32 1, %s4
  %s7 = scalar_select 0, %s6, %s4
  $region1: #{hbert_forward.1} parent=0
    #allocation2 [shape = 'u8[425984]{0}', space=vmem, size = 0x68000, scoped, tag = 'input window, operand 1, single buffered']
    #allocation3 [shape = 's32[1]{0}', space=sflag, size = 0x4, scoped, tag = 'scoped memory for hbert_forward.1']
    %8 = vsyncpa [#allocation3], 0
    // Predicated region
    $region2: #{hbert_forward.1} parent=1 // pred_check
      _
    $region3: #{hbert_forward.1} parent=1 // pred_check_branch
      %10 = sbr.rel (0) target = $region5
    $region4: #{hbert_forward.1} parent=1 // pred_region
      _
    $region5: #{hbert_forward.1} parent=1 // pred_fallthru
      _
    // Predicated region
    $region6: #{hbert_forward.1} parent=1 // pred_check
      _
    $region7: #{hbert_forward.1} parent=1 // pred_check_branch
      %12 = sbr.rel (0) target = $region9
    $region8: #{hbert_forward.1} parent=1 // pred_region
      %s14 = ssub.s32 13312, 13312
      %15 = vsyncadd [#allocation3], %s14
      %s16 = sshll.u32 [#allocation2], 4
      %s17 = int_to_ptr.vmem [resolvable:$true] %s16
      %22 = dma.hbm_to_vmem [thread:$0]  %s1, 13312, %s17, [#allocation3], 256, 256, 16
    $region9: #{hbert_forward.1} parent=1 // pred_fallthru
      _
    // Predicated region
    $region10: #{hbert_forward.1} parent=1 // pred_check
      _
    $region11: #{hbert_forward.1} parent=1 // pred_check_branch
      %24 = sbr.rel (0) target = $region13
    $region12: #{hbert_forward.1} parent=1 // pred_region
      _
    $region13: #{hbert_forward.1} parent=1 // pred_fallthru
      _
    // Predicated region
    $region14: #{hbert_forward.1} parent=1 // pred_check
      _
    $region15: #{hbert_forward.1} parent=1 // pred_check_branch
      %26 = sbr.rel (0) target = $region17
    $region16: #{hbert_forward.1} parent=1 // pred_region
      %27 = dma.done [#allocation3], 13312
    $region17: #{hbert_forward.1} parent=1 // pred_fallthru
      _
    %v28 = vld [vmem:[%s0] sm:$0xff]
    %v29 = vld [vmem:[%s0 + $0x8] sm:$0xff]
    %v30 = vld [vmem:[%s0 + $0x10] sm:$0xff]
    %v31 = vld [vmem:[%s0 + $0x18] sm:$0xff]
    %v32 = vld [vmem:[%s0 + $0x20] sm:$0xff]
    %v33 = vld [vmem:[#allocation2] sm:$0xff]
    %v34 = vld [vmem:[#allocation2 + $0x10] sm:$0xff]
    %v35 = vld [vmem:[#allocation2 + $0x20] sm:$0xff]
    %v36 = vld [vmem:[#allocation2 + $0x30] sm:$0xff]
    %v37 = vld [vmem:[#allocation2 + $0x40] sm:$0xff]
    %v38 = vld [vmem:[#allocation2 + $0x48] sm:$0xff]
    %v39 = vld [vmem:[#allocation2 + $0x50] sm:$0xff]
    %v40 = vld [vmem:[#allocation2 + $0x58] sm:$0xff]
    %v41 = vld [vmem:[#allocation2 + $0x60] sm:$0xff]
    %v42 = vld [vmem:[#allocation2 + $0x68] sm:$0xff]
    %v43 = vld [vmem:[#allocation2 + $0x70] sm:$0xff]
    %v44 = vld [vmem:[#allocation2 + $0x78] sm:$0xff]
    %v45 = vld [vmem:[#allocation2 + $0x80] sm:$0xff]
    %v46 = vld [vmem:[#allocation2 + $0x88] sm:$0xff]
    %v47 = vld [vmem:[#allocation2 + $0x90] sm:$0xff]
    %v48 = vld [vmem:[#allocation2 + $0x98] sm:$0xff]
    %v49 = vld [vmem:[#allocation2 + $0xa0] sm:$0xff]
    %v50 = vld [vmem:[#allocation2 + $0xa8] sm:$0xff]
    %v51 = vld [vmem:[#allocation2 + $0xb0] sm:$0xff]
    %v52 = vld [vmem:[#allocation2 + $0xb8] sm:$0xff]
    %v53 = vld [vmem:[#allocation2 + $0xc0] sm:$0xff]
    %v54 = vld [vmem:[#allocation2 + $0xc8] sm:$0xff]
    %v55 = vld [vmem:[#allocation2 + $0xd0] sm:$0xff]
    %v56 = vld [vmem:[#allocation2 + $0xd8] sm:$0xff]
    %v57 = vld [vmem:[#allocation2 + $0xe0] sm:$0xff]
    %v58 = vld [vmem:[#allocation2 + $0xe8] sm:$0xff]
    %v59 = vld [vmem:[#allocation2 + $0xf0] sm:$0xff]
    %v60 = vld [vmem:[#allocation2 + $0xf8] sm:$0xff]
    %v61 = vld [vmem:[#allocation2 + $0x100] sm:$0xff]
    %v62 = vld [vmem:[#allocation2 + $0x108] sm:$0xff]
    %v63 = vld [vmem:[#allocation2 + $0x110] sm:$0xff]
    %v64 = vld [vmem:[#allocation2 + $0x118] sm:$0xff]
    %v65 = vld [vmem:[#allocation2 + $0x120] sm:$0xff]
    %v66 = vld [vmem:[#allocation2 + $0x128] sm:$0xff]
    %v67 = vld [vmem:[#allocation2 + $0x130] sm:$0xff]
    %v68 = vld [vmem:[#allocation2 + $0x138] sm:$0xff]
    %v69 = vld [vmem:[#allocation2 + $0x140] sm:$0xff]
    %v70 = vld [vmem:[#allocation2 + $0x150] sm:$0xff]
    %v71 = vld [vmem:[#allocation2 + $0x160] sm:$0xff]
    %v72 = vld [vmem:[#allocation2 + $0x170] sm:$0xff]
    %v73 = vld [vmem:[#allocation2 + $0x180] sm:$0xff]
    %v74 = vld [vmem:[#allocation2 + $0x190] sm:$0xff]
    %v75 = vld [vmem:[#allocation2 + $0x1a0] sm:$0xff]
    %v76 = vld [vmem:[#allocation2 + $0x1b0] sm:$0xff]
    %v77 = vld [vmem:[#allocation2 + $0x1c0] sm:$0xff]
    %v78 = vld [vmem:[#allocation2 + $0x1d0] sm:$0xff]
    %v79 = vld [vmem:[#allocation2 + $0x1e0] sm:$0xff]
    %v80 = vld [vmem:[#allocation2 + $0x1f0] sm:$0xff]
    %v81 = vld [vmem:[#allocation2 + $0x200] sm:$0xff]
    %v82 = vld [vmem:[#allocation2 + $0x210] sm:$0xff]
    %v83 = vld [vmem:[#allocation2 + $0x220] sm:$0xff]
    %v84 = vld [vmem:[#allocation2 + $0x230] sm:$0xff]
    %v85 = vld [vmem:[#allocation2 + $0x240] sm:$0xff]
    %v86 = vld [vmem:[#allocation2 + $0x250] sm:$0xff]
    %v87 = vld [vmem:[#allocation2 + $0x260] sm:$0xff]
    %v88 = vld [vmem:[#allocation2 + $0x270] sm:$0xff]
    %v89 = vld [vmem:[#allocation2 + $0x280] sm:$0xff]
    %v90 = vld [vmem:[#allocation2 + $0x290] sm:$0xff]
    %v91 = vld [vmem:[#allocation2 + $0x2a0] sm:$0xff]
    %v92 = vld [vmem:[#allocation2 + $0x2b0] sm:$0xff]
    %v93 = vld [vmem:[#allocation2 + $0x2c0] sm:$0xff]
    %v94 = vld [vmem:[#allocation2 + $0x2d0] sm:$0xff]
    %v95 = vld [vmem:[#allocation2 + $0x2e0] sm:$0xff]
    %v96 = vld [vmem:[#allocation2 + $0x2f0] sm:$0xff]
    %v97 = vld [vmem:[#allocation2 + $0x300] sm:$0xff]
    %v98 = vld [vmem:[#allocation2 + $0x310] sm:$0xff]
    %v99 = vld [vmem:[#allocation2 + $0x320] sm:$0xff]
    %v100 = vld [vmem:[#allocation2 + $0x330] sm:$0xff]
    %v101 = vld [vmem:[%s2] ss:$0 sm:$0xff]
    %v102 = vld [vmem:[%s2 + $0x1] ss:$0 sm:$0xff]
    %v103 = vld [vmem:[%s2 + $0x2] ss:$0 sm:$0xff]
    %v104 = vld [vmem:[%s2 + $0x3] ss:$0 sm:$0xff]
    %v105 = vld [vmem:[%s2 + $0x4] ss:$0 sm:$0xff]
    %v106 = vld [vmem:[%s2 + $0x6] ss:$0 sm:$0xff]
    %vm107 = vcmask 261120
    %v109 = vsel %vm107, %v28, 0
    %v112 = vsel %vm107, %v29, 0
    %v115 = vsel %vm107, %v30, 0
    %v118 = vsel %vm107, %v31, 0
    %120 = vmatprep.subr.mxu0 0.0
    %121 = vmatpush1.msra.mxu0 %v33
    %122 = vmatprep.subr.mxu0 0.0
    %123 = vmatpush1.msra.mxu0 %v34
    %124 = vmatprep.subr.mxu0 0.0
    %125 = vmatpush1.msra.mxu0 %v35
    %126 = vmatprep.subr.mxu0 0.0
    %127 = vmatpush1.msra.mxu0 %v36
    %128 = vmatprep.subr.mxu0 0.0
    %129 = vmatpush1.msra.mxu0 0.0
    %130 = vmatprep.subr.mxu0 0.0
    %131 = vmatpush1.msra.mxu0 0.0
    %132 = vmatprep.subr.mxu0 0.0
    %133 = vmatpush1.msra.mxu0 0.0
    %134 = vmatprep.subr.mxu0 0.0
    %135 = vmatpush1.msra.mxu0 0.0
    %136 = vmatprep.subr.mxu0 0.0
    %137 = vmatpush1.msra.mxu0 0.0
    %138 = vmatprep.subr.mxu0 0.0
    %139 = vmatpush1.msra.mxu0 0.0
    %140 = vmatprep.subr.mxu0 0.0
    %141 = vmatpush1.msra.mxu0 0.0
    %142 = vmatprep.subr.mxu0 0.0
    %143 = vmatpush1.msra.mxu0 0.0
    %144 = vmatprep.subr.mxu0 0.0
    %145 = vmatpush1.msra.mxu0 0.0
    %146 = vmatprep.subr.mxu0 0.0
    %147 = vmatpush1.msra.mxu0 0.0
    %148 = vmatprep.subr.mxu0 0.0
    %149 = vmatpush1.msra.mxu0 0.0
    %150 = vmatprep.subr.mxu0 0.0
    %151 = vmatpush1.msra.mxu0 0.0
    %152 = vmatprep.subr.mxu0 0.0
    %153 = vmatpush1.msra.mxu0 0.0
    %154 = vmatprep.subr.mxu0 0.0
    %155 = vmatpush1.msra.mxu0 0.0
    %156 = vmatprep.subr.mxu0 0.0
    %157 = vmatpush1.msra.mxu0 0.0
    %158 = vmatprep.subr.mxu0 0.0
    %159 = vmatpush1.msra.mxu0 0.0
    %160 = vmatprep.subr.mxu0 0.0
    %161 = vmatpush1.msra.mxu0 0.0
    %162 = vmatprep.subr.mxu0 0.0
    %163 = vmatpush1.msra.mxu0 0.0
    %164 = vmatprep.subr.mxu0 0.0
    %165 = vmatpush1.msra.mxu0 0.0
    %166 = vmatprep.subr.mxu0 0.0
    %167 = vmatpush1.msra.mxu0 0.0
    %168 = vmatprep.subr.mxu0 0.0
    %169 = vmatpush1.msra.mxu0 0.0
    %170 = vmatprep.subr.mxu0 0.0
    %171 = vmatpush1.msra.mxu0 0.0
    %172 = vmatprep.subr.mxu0 0.0
    %173 = vmatpush1.msra.mxu0 0.0
    %174 = vmatprep.subr.mxu0 0.0
    %175 = vmatpush1.msra.mxu0 0.0
    %176 = vmatprep.subr.mxu0 0.0
    %177 = vmatpush1.msra.mxu0 0.0
    %178 = vmatprep.subr.mxu0 0.0
    %179 = vmatpush1.msra.mxu0 0.0
    %180 = vmatprep.subr.mxu0 0.0
    %181 = vmatpush1.msra.mxu0 0.0
    %182 = vmatprep.subr.mxu0 0.0
    %183 = vmatpush1.msra.mxu0 0.0
    %184 = vmatprep.mubr.f32.mxu0 0.0
    %185 = vmatmul.mubr.f32.gmra.mrb[0].mxu0 %v109
    %v186 = vpop.f32.mrb[0].mxu0
    %v187 = vadd.f32 %v101, %v186
    %v188 = vpop.f32.mrb[0].mxu0
    %189 = vmatprep.mubr.f32.mxu0 0.0
    %190 = vmatmul.mubr.f32.gmra.mrb[0].mxu0 %v112
    %v191 = vpop.f32.mrb[0].mxu0
    %v192 = vadd.f32 %v101, %v191
    %v193 = vpop.f32.mrb[0].mxu0
    %194 = vmatprep.mubr.f32.mxu0 0.0
    %195 = vmatmul.mubr.f32.gmra.mrb[0].mxu0 %v115
    %v196 = vpop.f32.mrb[0].mxu0
    %v197 = vadd.f32 %v101, %v196
    %v198 = vpop.f32.mrb[0].mxu0
    %199 = vmatprep.mubr.f32.mxu0 0.0
    %200 = vmatmul.mubr.f32.gmra.mrb[0].mxu0 %v118
    %v201 = vpop.f32.mrb[0].mxu0
    %v202 = vadd.f32 %v101, %v201
    %v203 = vpop.f32.mrb[0].mxu0
    %204 = vdwg.mxu0
    %v205 = vtanh.pop %v187
    %v206 = vtanh.pop %v192
    %v207 = vtanh.pop %v197
    %v208 = vtanh.pop %v202
    %v209 = vmul.f32 %v205, %v102
    %v210 = vmul.f32 %v206, %v102
    %v211 = vmul.f32 %v207, %v102
    %v212 = vmul.f32 %v208, %v102
    %v213 = vsel %vm107, %v209, 0.0
    %214 = vadd.xlane.f32.xlu0 %v213
    %v215 = vpop.xlane.xlu0 %214
    %v216 = vsel %vm107, %v210, 0.0
    %217 = vadd.xlane.f32.xlu0 %v216
    %v218 = vpop.xlane.xlu0 %217
    %v219 = vsel %vm107, %v211, 0.0
    %220 = vadd.xlane.f32.xlu0 %v219
    %v221 = vpop.xlane.xlu0 %220
    %v222 = vsel %vm107, %v212, 0.0
    %223 = vadd.xlane.f32.xlu0 %v222
    %v224 = vpop.xlane.xlu0 %223
    %v225 = vadd.f32 %v215, %v103
    %v226 = vadd.f32 %v218, %v103
    %v227 = vadd.f32 %v221, %v103
    %v228 = vadd.f32 %v224, %v103
    %v229 = vmax.f32 %v225, %v226
    %v230 = vmax.f32 %v229, %v227
    %v231 = vmax.f32 %v230, %v228
    %v232 = vsub.f32 %v225, %v231
    %v233 = vmul.f32 %v232, 1.442695
    %v234 = vpow.pop %v233
    %236 = vset.pattern.permute.xlu0 0
    %237 = vperm.xlu0 %236, %v234
    %v238 = vpop.permute.xlu0 %237
    %v240 = vmul.f32 %v238, %v205
    %v241 = vsub.f32 %v226, %v231
    %v242 = vmul.f32 %v241, 1.442695
    %v243 = vpow.pop %v242
    %v244 = vadd.f32 %v234, %v243
    %246 = vset.pattern.permute.xlu0 0
    %247 = vperm.xlu0 %246, %v243
    %v248 = vpop.permute.xlu0 %247
    %v250 = vmul.f32 %v248, %v206
    %v251 = vadd.f32 %v240, %v250
    %v252 = vsub.f32 %v227, %v231
    %v253 = vmul.f32 %v252, 1.442695
    %v254 = vpow.pop %v253
    %v255 = vadd.f32 %v244, %v254
    %257 = vset.pattern.permute.xlu0 0
    %258 = vperm.xlu0 %257, %v254
    %v259 = vpop.permute.xlu0 %258
    %v261 = vmul.f32 %v259, %v207
    %v262 = vadd.f32 %v251, %v261
    %v263 = vsub.f32 %v228, %v231
    %v264 = vmul.f32 %v263, 1.442695
    %v265 = vpow.pop %v264
    %v266 = vadd.f32 %v255, %v265
    %268 = vset.pattern.permute.xlu0 0
    %269 = vperm.xlu0 %268, %v265
    %v270 = vpop.permute.xlu0 %269
    %v272 = vmul.f32 %v270, %v208
    %v273 = vadd.f32 %v262, %v272
    %v274 = vrcp.pop %v266
    %276 = vset.pattern.permute.xlu0 0
    %277 = vperm.xlu0 %276, %v274
    %v278 = vpop.permute.xlu0 %277
    %v280 = vmul.f32 %v273, %v278
    %282 = vset.pattern.permute.xlu0 0
    %283 = vperm.xlu0 %282, %v32
    %v284 = vpop.permute.xlu0 %283
    %v286 = vmul.f32 %v284, %v104
    %v287 = vadd.f32 %v286, %v105
    %v288 = vtanh.pop %v287
    %290 = vrot.lane.b32.xlu0 %v288, 32
    %v291 = vpop.permute.xlu0 %290
    %v293 = vsel %vm107, %v280, %v291
    %vm294 = vcmask 523264
    %v295 = vsel %vm294, %v293, %v32
    %296 = vmatprep.subr.mxu0 %v38
    %297 = vmatpush1.msra.mxu0 %v37
    %298 = vmatprep.subr.mxu0 %v40
    %299 = vmatpush1.msra.mxu0 %v39
    %300 = vmatprep.subr.mxu0 %v42
    %301 = vmatpush1.msra.mxu0 %v41
    %302 = vmatprep.subr.mxu0 %v44
    %303 = vmatpush1.msra.mxu0 %v43
    %304 = vmatprep.subr.mxu0 %v46
    %305 = vmatpush1.msra.mxu0 %v45
    %306 = vmatprep.subr.mxu0 %v48
    %307 = vmatpush1.msra.mxu0 %v47
    %308 = vmatprep.subr.mxu0 %v50
    %309 = vmatpush1.msra.mxu0 %v49
    %310 = vmatprep.subr.mxu0 %v52
    %311 = vmatpush1.msra.mxu0 %v51
    %312 = vmatprep.subr.mxu0 %v54
    %313 = vmatpush1.msra.mxu0 %v53
    %314 = vmatprep.subr.mxu0 %v56
    %315 = vmatpush1.msra.mxu0 %v55
    %316 = vmatprep.subr.mxu0 %v58
    %317 = vmatpush1.msra.mxu0 %v57
    %318 = vmatprep.subr.mxu0 %v60
    %319 = vmatpush1.msra.mxu0 %v59
    %320 = vmatprep.subr.mxu0 %v62
    %321 = vmatpush1.msra.mxu0 %v61
    %322 = vmatprep.subr.mxu0 %v64
    %323 = vmatpush1.msra.mxu0 %v63
    %324 = vmatprep.subr.mxu0 %v66
    %325 = vmatpush1.msra.mxu0 %v65
    %326 = vmatprep.subr.mxu0 %v68
    %327 = vmatpush1.msra.mxu0 %v67
    %328 = vmatprep.subr.mxu0 0.0
    %329 = vmatpush1.msra.mxu0 0.0
    %330 = vmatprep.subr.mxu0 0.0
    %331 = vmatpush1.msra.mxu0 0.0
    %332 = vmatprep.subr.mxu0 0.0
    %333 = vmatpush1.msra.mxu0 0.0
    %334 = vmatprep.subr.mxu0 0.0
    %335 = vmatpush1.msra.mxu0 0.0
    %336 = vmatprep.subr.mxu0 0.0
    %337 = vmatpush1.msra.mxu0 0.0
    %338 = vmatprep.subr.mxu0 0.0
    %339 = vmatpush1.msra.mxu0 0.0
    %340 = vmatprep.subr.mxu0 0.0
    %341 = vmatpush1.msra.mxu0 0.0
    %342 = vmatprep.subr.mxu0 0.0
    %343 = vmatpush1.msra.mxu0 0.0
    %344 = vmatprep.subr.mxu0 0.0
    %345 = vmatpush1.msra.mxu0 0.0
    %346 = vmatprep.subr.mxu0 0.0
    %347 = vmatpush1.msra.mxu0 0.0
    %348 = vmatprep.subr.mxu0 0.0
    %349 = vmatpush1.msra.mxu0 0.0
    %350 = vmatprep.subr.mxu0 0.0
    %351 = vmatpush1.msra.mxu0 0.0
    %352 = vmatprep.subr.mxu0 0.0
    %353 = vmatpush1.msra.mxu0 0.0
    %354 = vmatprep.subr.mxu0 0.0
    %355 = vmatpush1.msra.mxu0 0.0
    %356 = vmatprep.subr.mxu0 0.0
    %357 = vmatpush1.msra.mxu0 0.0
    %358 = vmatprep.subr.mxu0 0.0
    %359 = vmatpush1.msra.mxu0 0.0
    %360 = vmatprep.mubr.f32.mxu0 0.0
    %361 = vmatmul.mubr.f32.gmra.mrb[0].mxu0 %v295
    %v362 = vpop.f32.mrb[0].mxu0
    %v363 = vadd.f32 0.0, %v362
    %v364 = vpop.f32.mrb[0].mxu0
    %v365 = vadd.f32 0.0, %v364
    %366 = vdwg.mxu0
    %v367 = vmax.f32 %v363, 0.0
    %v368 = vmax.f32 %v365, 0.0
    %369 = vmatprep.subr.mxu0 0.0
    %370 = vmatpush1.msra.mxu0 %v69
    %371 = vmatprep.subr.mxu0 0.0
    %372 = vmatpush1.msra.mxu0 %v70
    %373 = vmatprep.subr.mxu0 0.0
    %374 = vmatpush1.msra.mxu0 %v71
    %375 = vmatprep.subr.mxu0 0.0
    %376 = vmatpush1.msra.mxu0 %v72
    %377 = vmatprep.subr.mxu0 0.0
    %378 = vmatpush1.msra.mxu0 %v73
    %379 = vmatprep.subr.mxu0 0.0
    %380 = vmatpush1.msra.mxu0 %v74
    %381 = vmatprep.subr.mxu0 0.0
    %382 = vmatpush1.msra.mxu0 %v75
    %383 = vmatprep.subr.mxu0 0.0
    %384 = vmatpush1.msra.mxu0 %v76
    %385 = vmatprep.subr.mxu0 0.0
    %386 = vmatpush1.msra.mxu0 %v77
    %387 = vmatprep.subr.mxu0 0.0
    %388 = vmatpush1.msra.mxu0 %v78
    %389 = vmatprep.subr.mxu0 0.0
    %390 = vmatpush1.msra.mxu0 %v79
    %391 = vmatprep.subr.mxu0 0.0
    %392 = vmatpush1.msra.mxu0 %v80
    %393 = vmatprep.subr.mxu0 0.0
    %394 = vmatpush1.msra.mxu0 %v81
    %395 = vmatprep.subr.mxu0 0.0
    %396 = vmatpush1.msra.mxu0 %v82
    %397 = vmatprep.subr.mxu0 0.0
    %398 = vmatpush1.msra.mxu0 %v83
    %399 = vmatprep.subr.mxu0 0.0
    %400 = vmatpush1.msra.mxu0 %v84
    %401 = vmatprep.subr.mxu0 0.0
    %402 = vmatpush1.msra.mxu0 %v85
    %403 = vmatprep.subr.mxu0 0.0
    %404 = vmatpush1.msra.mxu0 %v86
    %405 = vmatprep.subr.mxu0 0.0
    %406 = vmatpush1.msra.mxu0 %v87
    %407 = vmatprep.subr.mxu0 0.0
    %408 = vmatpush1.msra.mxu0 %v88
    %409 = vmatprep.subr.mxu0 0.0
    %410 = vmatpush1.msra.mxu0 %v89
    %411 = vmatprep.subr.mxu0 0.0
    %412 = vmatpush1.msra.mxu0 %v90
    %413 = vmatprep.subr.mxu0 0.0
    %414 = vmatpush1.msra.mxu0 %v91
    %415 = vmatprep.subr.mxu0 0.0
    %416 = vmatpush1.msra.mxu0 %v92
    %417 = vmatprep.subr.mxu0 0.0
    %418 = vmatpush1.msra.mxu0 %v93
    %419 = vmatprep.subr.mxu0 0.0
    %420 = vmatpush1.msra.mxu0 %v94
    %421 = vmatprep.subr.mxu0 0.0
    %422 = vmatpush1.msra.mxu0 %v95
    %423 = vmatprep.subr.mxu0 0.0
    %424 = vmatpush1.msra.mxu0 %v96
    %425 = vmatprep.subr.mxu0 0.0
    %426 = vmatpush1.msra.mxu0 %v97
    %427 = vmatprep.subr.mxu0 0.0
    %428 = vmatpush1.msra.mxu0 %v98
    %429 = vmatprep.subr.mxu0 0.0
    %430 = vmatpush1.msra.mxu0 %v99
    %431 = vmatprep.subr.mxu0 0.0
    %432 = vmatpush1.msra.mxu0 %v100
    %433 = vmatprep.mubr.f32.mxu0 %v368
    %434 = vmatmul.mubr.f32.gmra.mrb[0].mxu0 %v367
    %v435 = vpop.f32.mrb[0].mxu0
    %v436 = vadd.f32 %v106, %v435
    %v437 = vpop.f32.mrb[0].mxu0
    %438 = vdwg.mxu0
    %439 = vst [vmem:[%s3] sm:$0xff] %v436
    // Predicated region
    $region18: #{hbert_forward.1} parent=1 // pred_check
      _
    $region19: #{hbert_forward.1} parent=1 // pred_check_branch
      %441 = sbr.rel (0) target = $region21
    $region20: #{hbert_forward.1} parent=1 // pred_region
      _
    $region21: #{hbert_forward.1} parent=1 // pred_fallthru
      _
    // Predicated region
    $region22: #{hbert_forward.1} parent=1 // pred_check
      _
    $region23: #{hbert_forward.1} parent=1 // pred_check_branch
      %443 = sbr.rel (0) target = $region25
    $region24: #{hbert_forward.1} parent=1 // pred_region
      _
    $region25: #{hbert_forward.1} parent=1 // pred_fallthru
      _
    %444 = vsyncpa [#allocation3], 1

</llo_original>
